<compile_context>
chip_gen: v6e
topology: v6e:2x2x1
jax: 0.10.0
libtpu: 0.0.40
codegen_flags: <defaults>
</compile_context>

<pallas_src>
import jax
import jax.numpy as jnp
from jax.experimental import pallas as pl
from jax.experimental.pallas import tpu as pltpu


def _mish_kernel(x_ref, o_ref):
    x = x_ref[...].astype(jnp.float32)
    d = jnp.exp(-jnp.abs(x))          # single EUP transcendental, d in (0, 1]
    d2 = d * d
    pos = x >= 0.0
    num = jnp.where(pos, 1.0 + 2.0 * d, 2.0 * d + d2)
    den = jnp.where(pos, 1.0 + 2.0 * d + 2.0 * d2, 2.0 + 2.0 * d + d2)
    # Exact divide (kernel is memory-bound; full f32 accuracy matters more).
    o_ref[...] = (x * (num / den)).astype(o_ref.dtype)


def mish(x, *, tile_rows=512, lane=1024):
    """Elementwise Mish on an arbitrary-shaped array via a lane-dense 2D slab."""
    orig_shape = x.shape
    orig_dtype = x.dtype
    n = x.size
    if n == 0:
        return x

    flat = x.reshape(-1)

    # Pad only when needed, and only up to the next multiple of `lane` (<=1023 elems).
    pad = (-n) % lane
    if pad:
        flat = jnp.pad(flat, (0, pad))
    rows = flat.size // lane
    x2d = flat.reshape(rows, lane)

    # Block choice: (512, 1024) (~2 MiB f32) when there is that much data,
    # otherwise a single block equal to the full array (always a legal block).
    block_rows = rows if rows <= tile_rows else tile_rows
    grid = (pl.cdiv(rows, block_rows),)

    out2d = pl.pallas_call(
        _mish_kernel,
        out_shape=jax.ShapeDtypeStruct((rows, lane), orig_dtype),
        grid_spec=pltpu.PrefetchScalarGridSpec(
            num_scalar_prefetch=0,
            grid=grid,
            in_specs=[pl.BlockSpec((block_rows, lane), lambda i: (i, 0))],
            out_specs=pl.BlockSpec((block_rows, lane), lambda i: (i, 0)),
        ),
        compiler_params=pltpu.CompilerParams(
            dimension_semantics=("parallel",),
        ),
    )(x2d)

    if pad:
        return out2d.reshape(-1)[:n].reshape(orig_shape)
    return out2d.reshape(orig_shape)


def mish_reference(x):
    # Matches torch: x * tanh(F.softplus(x)), softplus threshold=20.
    xf = x.astype(jnp.float32)
    sp = jnp.where(xf > 20.0, xf, jnp.log1p(jnp.exp(jnp.minimum(xf, 20.0))))
    return (xf * jnp.tanh(sp)).astype(x.dtype)


if __name__ == "__main__":
    key = jax.random.PRNGKey(0)

    # Shape implied by the module's typical NCHW use: batch=2, channels=4, 16x16.
    x = jax.random.normal(key, (2, 4, 16, 16), dtype=jnp.float32) * 3.0
    y = mish(x)
    jax.block_until_ready(y)
    y_ref = mish_reference(x)
    assert y.shape == x.shape and y.dtype == x.dtype
    assert jnp.allclose(y, y_ref, atol=1e-5, rtol=1e-4)

    # Unaligned element count exercises the (minimal) pad path.
    x2 = jax.random.normal(jax.random.PRNGKey(0), (3, 5, 7, 11), dtype=jnp.float32) * 5.0
    y2 = mish(x2)
    jax.block_until_ready(y2)
    assert jnp.allclose(y2, mish_reference(x2), atol=1e-5, rtol=1e-4)

    print("KERNEL_OK")
</pallas_src>

<mosaic_0001>
module attributes {stable_mosaic.version = 11 : i64} {
  func.func @_mish_kernel(%arg0: i32, %arg1: memref<2x1024xf32, #tpu.memory_space<vmem>>, %arg2: memref<2x1024xf32, #tpu.memory_space<vmem>>) attributes {dimension_semantics = [#tpu.dimension_semantics<parallel>], iteration_bounds = array<i64: 1>, scalar_prefetch = 0 : i64, scratch_operands = 0 : i64, tpu.core_type = #tpu.core_type<tc>, window_params = [{transform_indices = @transform_0, window_bounds = array<i64: 2, 1024>}, {transform_indices = @transform_1, window_bounds = array<i64: 2, 1024>}]} {
    %c0 = arith.constant 0 : index
    %c0_0 = arith.constant 0 : index
    %0 = vector.load %arg1[%c0, %c0_0] : memref<2x1024xf32, #tpu.memory_space<vmem>>, vector<2x1024xf32>
    %1 = math.absf %0 : vector<2x1024xf32>
    %cst = arith.constant 0.000000e+00 : f32
    %2 = vector.broadcast %cst : f32 to vector<2x1024xf32>
    %3 = arith.subf %2, %1 : vector<2x1024xf32>
    %4 = math.exp %3 : vector<2x1024xf32>
    %5 = arith.mulf %4, %4 : vector<2x1024xf32>
    %cst_1 = arith.constant 0.000000e+00 : f32
    %6 = vector.broadcast %cst_1 : f32 to vector<2x1024xf32>
    %7 = arith.cmpf oge, %0, %6 : vector<2x1024xf32>
    %cst_2 = arith.constant 2.000000e+00 : f32
    %8 = vector.broadcast %cst_2 : f32 to vector<2x1024xf32>
    %9 = arith.mulf %8, %4 : vector<2x1024xf32>
    %cst_3 = arith.constant 1.000000e+00 : f32
    %10 = vector.broadcast %cst_3 : f32 to vector<2x1024xf32>
    %11 = arith.addf %10, %9 : vector<2x1024xf32>
    %cst_4 = arith.constant 2.000000e+00 : f32
    %12 = vector.broadcast %cst_4 : f32 to vector<2x1024xf32>
    %13 = arith.mulf %12, %4 : vector<2x1024xf32>
    %14 = arith.addf %13, %5 : vector<2x1024xf32>
    %15 = arith.select %7, %11, %14 : vector<2x1024xi1>, vector<2x1024xf32>
    %cst_5 = arith.constant 2.000000e+00 : f32
    %16 = vector.broadcast %cst_5 : f32 to vector<2x1024xf32>
    %17 = arith.mulf %16, %4 : vector<2x1024xf32>
    %cst_6 = arith.constant 1.000000e+00 : f32
    %18 = vector.broadcast %cst_6 : f32 to vector<2x1024xf32>
    %19 = arith.addf %18, %17 : vector<2x1024xf32>
    %cst_7 = arith.constant 2.000000e+00 : f32
    %20 = vector.broadcast %cst_7 : f32 to vector<2x1024xf32>
    %21 = arith.mulf %20, %5 : vector<2x1024xf32>
    %22 = arith.addf %19, %21 : vector<2x1024xf32>
    %cst_8 = arith.constant 2.000000e+00 : f32
    %23 = vector.broadcast %cst_8 : f32 to vector<2x1024xf32>
    %24 = arith.mulf %23, %4 : vector<2x1024xf32>
    %cst_9 = arith.constant 2.000000e+00 : f32
    %25 = vector.broadcast %cst_9 : f32 to vector<2x1024xf32>
    %26 = arith.addf %25, %24 : vector<2x1024xf32>
    %27 = arith.addf %26, %5 : vector<2x1024xf32>
    %28 = arith.select %7, %22, %27 : vector<2x1024xi1>, vector<2x1024xf32>
    %29 = arith.divf %15, %28 : vector<2x1024xf32>
    %30 = arith.mulf %0, %29 : vector<2x1024xf32>
    %c0_10 = arith.constant 0 : index
    %c0_11 = arith.constant 0 : index
    %31 = vector.load %arg2[%c0_10, %c0_11] : memref<2x1024xf32, #tpu.memory_space<vmem>>, vector<2x1024xf32>
    tpu.vector_store %arg2[%c0_10, %c0_11], %30 {strides = array<i32>} : memref<2x1024xf32, #tpu.memory_space<vmem>>, vector<2x1024xf32>,
    return
  }
  func.func @transform_0(%arg0: i32) -> (i32, i32) {
    %c0_i32 = arith.constant 0 : i32
    %c0_i32_0 = arith.constant 0 : i32
    return %arg0, %c0_i32 : i32, i32
  }
  func.func @transform_1(%arg0: i32) -> (i32, i32) {
    %c0_i32 = arith.constant 0 : i32
    %c0_i32_0 = arith.constant 0 : i32
    return %arg0, %c0_i32 : i32, i32
  }
}

</mosaic_0001>

<llo_original>
// kernel: tpu_custom_call.1
$region0: #{tpu_custom_call.1}
  #allocation0 [shape = 'u32[]', space=smem, size = 0x4, offset = 0x4, fixed_abs, tag = 'smem constant byte address 0x4 - core index']
  #allocation1 [shape = 'u32[144,128]{1,0:T(1,128)}', space=vmem, size = 0x12000, scoped, tag = 'internal scratch']
  %s0 = inlined_call_operand.hbm [shape: f32[2,1024], index: 0, kind: input, shape index: {}]
  %s1 = inlined_call_operand.hbm [shape: f32[2,1024], index: 1, kind: output, shape index: {}]
  %s2 = sld [smem:[#allocation0]]
  $region18: #{tpu_custom_call.1} parent=0
    _
  %s4 = ssub.s32 1, %s2
  %s5 = scalar_select 0, %s4, %s2
  $region1: #{tpu_custom_call.1} parent=0
    #allocation2 [shape = 'u8[8192]{0}', space=vmem, size = 0x2000, scoped, tag = 'input window, operand 0, single buffered']
    #allocation3 [shape = 's32[1]{0}', space=sflag, size = 0x4, scoped, tag = 'scoped memory for tpu_custom_call.1']
    #allocation4 [shape = 's32[1]{0}', space=sflag, size = 0x4, scoped, tag = 'scoped memory for tpu_custom_call.1']
    #allocation5 [shape = 'u8[8192]{0}', space=vmem, size = 0x2000, scoped, tag = 'output window, operand 0, single buffered']
    %6 = vsyncpa [#allocation3], 0
    %7 = vsyncpa [#allocation4], 0
    // Predicated region
    $region2: #{tpu_custom_call.1} parent=1 // pred_check
      _
    $region3: #{tpu_custom_call.1} parent=1 // pred_check_branch
      %9 = sbr.rel (0) target = $region5
    $region4: #{tpu_custom_call.1} parent=1 // pred_region
      %s11 = ssub.s32 256, 256
      %12 = vsyncadd [#allocation3], %s11
      %s14 = sshll.u32 [#allocation2], 4
      %s15 = int_to_ptr.vmem [resolvable:$true] %s14
      %17 = dma.hbm_to_vmem [thread:$0]  %s0, 256, %s15, [#allocation3]
    $region5: #{tpu_custom_call.1} parent=1 // pred_fallthru
      _
    // Predicated region
    $region6: #{tpu_custom_call.1} parent=1 // pred_check
      _
    $region7: #{tpu_custom_call.1} parent=1 // pred_check_branch
      %19 = sbr.rel (0) target = $region9
    $region8: #{tpu_custom_call.1} parent=1 // pred_region
      %20 = dma.done [#allocation3], 256
    $region9: #{tpu_custom_call.1} parent=1 // pred_fallthru
      _
    %v21 = vld [vmem:[#allocation2] sm:$0xff]
    %v22 = vld [vmem:[#allocation2 + $0x8] sm:$0xff]
    %v23 = vand.u32 2147483647, %v21
    %v24 = vand.u32 2147483647, %v22
    %v25 = vsub.f32 0.0, %v23
    %v26 = vsub.f32 0.0, %v24
    %v27 = vmul.f32 %v25, 1.442695
    %v28 = vpow.pop %v27
    %v29 = vmul.f32 %v26, 1.442695
    %v30 = vpow.pop %v29
    %v31 = vmul.f32 %v28, %v28
    %v32 = vmul.f32 %v30, %v30
    %vm33 = vcmp.ge.f32.partialorder %v21, 0.0
    %vm34 = vcmp.ge.f32.partialorder %v22, 0.0
    %v35 = vmul.f32 %v28, 2.0
    %v36 = vmul.f32 %v30, 2.0
    %v37 = vadd.f32 %v35, 1.0
    %v38 = vadd.f32 %v36, 1.0
    %v39 = vadd.f32 %v35, %v31
    %v40 = vadd.f32 %v36, %v32
    %v41 = vsel %vm33, %v37, %v39
    %v42 = vsel %vm34, %v38, %v40
    %v43 = vmul.f32 %v31, 2.0
    %v44 = vmul.f32 %v32, 2.0
    %v45 = vadd.f32 %v37, %v43
    %v46 = vadd.f32 %v38, %v44
    %v47 = vadd.f32 %v35, 2.0
    %v48 = vadd.f32 %v36, 2.0
    %v49 = vadd.f32 %v47, %v31
    %v50 = vadd.f32 %v48, %v32
    %v51 = vsel %vm33, %v45, %v49
    %v52 = vsel %vm34, %v46, %v50
    %v53 = vrcp.pop %v51
    %v54 = vmul.f32 %v41, %v53
    %v55 = vrcp.pop %v52
    %v56 = vmul.f32 %v42, %v55
    %v57 = vmul.f32 %v21, %v54
    %v58 = vmul.f32 %v22, %v56
    %59 = vst [vmem:[#allocation5] sm:$0xff] %v57
    %60 = vst [vmem:[#allocation5 + $0x8] sm:$0xff] %v58
    // Predicated region
    $region10: #{tpu_custom_call.1} parent=1 // pred_check
      _
    $region11: #{tpu_custom_call.1} parent=1 // pred_check_branch
      %62 = sbr.rel (0) target = $region13
    $region12: #{tpu_custom_call.1} parent=1 // pred_region
      %s64 = ssub.s32 256, 256
      %65 = vsyncadd [#allocation4], %s64
      %s67 = sshll.u32 [#allocation5], 4
      %s68 = int_to_ptr.vmem [resolvable:$true] %s67
      %70 = dma.vmem_to_hbm [thread:$0]  %s68, 256, %s1, [#allocation4]
    $region13: #{tpu_custom_call.1} parent=1 // pred_fallthru
      _
    // Predicated region
    $region14: #{tpu_custom_call.1} parent=1 // pred_check
      _
    $region15: #{tpu_custom_call.1} parent=1 // pred_check_branch
      %72 = sbr.rel (0) target = $region17
    $region16: #{tpu_custom_call.1} parent=1 // pred_region
      %73 = dma.done [#allocation4], 256
    $region17: #{tpu_custom_call.1} parent=1 // pred_fallthru
      _
    %74 = vsyncpa [#allocation3], 1
    %75 = vsyncpa [#allocation4], 1

</llo_original>
